<compile_context>
chip_gen: v6e
topology: v6e:2x2x1
jax: 0.10.0
libtpu: 0.0.40
codegen_flags: <defaults>
</compile_context>

<pallas_src>
import jax
import jax.numpy as jnp
from jax import lax
from jax.experimental import pallas as pl
from jax.experimental.pallas import tpu as pltpu


def _round_up(v, m):
    return ((v + m - 1) // m) * m


def _lane_multiple():
    # v6e/v7x MXUs are 2x256x256 -> prefer 256-multiples in the K/N (lane) dims.
    # v5e's 4x128x128 MXU is fine with 128. Detection failure falls back to 128 (always legal).
    try:
        kind = jax.devices()[0].device_kind.lower()
    except Exception:
        return 128
    return 256 if ("v6" in kind or "v7" in kind) else 128


def _pick_row_tile(R, row_tile):
    # Sublane-aligned row tiles (multiple of 8; 128-aligned once large). Shrink so the
    # "parallel" row axis has >= 2 grid steps when R allows it (v7x megacore: both TCs busy).
    TR = max(8, min(int(row_tile), _round_up(R, 8)))
    TR = _round_up(TR, 8)
    if TR >= 128:
        TR = (TR // 128) * 128
    if _round_up(R, TR) // TR < 2 and R > 8:
        TR = _round_up((R + 1) // 2, 8)
    return TR


def _fused_kernel(p_ref, w_ref, b_ref, o_ref):
    # p: (TR, CKK_pad) bf16   w: (CKK_pad, ED_pad) bf16   b: (1, ED_pad) f32
    acc = jnp.dot(p_ref[...], w_ref[...], preferred_element_type=jnp.float32)
    o_ref[...] = (acc + b_ref[...]).astype(o_ref.dtype)


def _two_stage_kernel(p_ref, wc_ref, wp_ref, b_ref, o_ref):
    # p: (TR, CKK_pad) bf16   wc: (CKK_pad, FD_pad) bf16   wp: (FD_pad, ED_pad) bf16
    # b: (1, ED_pad) f32.  Conv bias is folded into b (b = conv_b @ Wp + proj_b).
    feat = jnp.dot(p_ref[...], wc_ref[...], preferred_element_type=jnp.float32)
    acc = jnp.dot(feat.astype(wp_ref.dtype), wp_ref[...],
                  preferred_element_type=jnp.float32)
    o_ref[...] = (acc + b_ref[...]).astype(o_ref.dtype)


def make_hybrid_embed(conv_w, conv_b, proj_w, proj_b, *, patch,
                      compute_dtype=jnp.bfloat16, out_dtype=None, row_tile=512):
    """conv_w: (FD, C, k, k) OIHW stride-`patch` patch conv; proj_w: (ED, FD) nn.Linear weight.

    Returns apply(x) mapping x: (B, C, H, W) NCHW -> (B, N, ED). Weight fusion / padding is done
    once here. row_tile=512 is v7x-safe; v5e/v6e callers can pass 1024 for large batches.
    """
    out_dtype = compute_dtype if out_dtype is None else out_dtype
    FD, C = conv_w.shape[0], conv_w.shape[1]
    ED = proj_w.shape[0]
    CKK = C * patch * patch

    lane = _lane_multiple()
    CKK_pad = _round_up(CKK, lane)
    ED_pad = _round_up(ED, lane)
    FD_pad = _round_up(FD, 128)    # keep the small dim minimal: padding here is pure wasted work

    # --- weight prep (f32, once per weight set) ---
    wc = conv_w.reshape(FD, CKK).T.astype(jnp.float32)               # (CKK, FD)
    wp = proj_w.T.astype(jnp.float32)                                # (FD, ED)
    b_fused = (conv_b.astype(jnp.float32).reshape(1, FD) @ wp
               + proj_b.astype(jnp.float32).reshape(1, ED))          # (1, ED)
    b_pad = jnp.pad(b_fused, ((0, 0), (0, ED_pad - ED)))             # stays f32

    # Fuse conv+proj only when it does NOT blow up padded MXU work (per-row MACs).
    fuse = CKK_pad * ED_pad <= CKK_pad * FD_pad + FD_pad * ED_pad
    if fuse:
        w_fused = jnp.pad(wc @ wp, ((0, CKK_pad - CKK), (0, ED_pad - ED))).astype(compute_dtype)
        weights = (w_fused,)
        w_specs = [pl.BlockSpec((CKK_pad, ED_pad), lambda i: (0, 0),
                                pipeline_mode=pl.Buffered(1))]
        kernel = _fused_kernel
        w_bytes = CKK_pad * ED_pad * 2
        per_row_macs = CKK_pad * ED_pad
    else:
        wc_pad = jnp.pad(wc, ((0, CKK_pad - CKK), (0, FD_pad - FD))).astype(compute_dtype)
        wp_pad = jnp.pad(wp, ((0, FD_pad - FD), (0, ED_pad - ED))).astype(compute_dtype)
        weights = (wc_pad, wp_pad)
        w_specs = [pl.BlockSpec((CKK_pad, FD_pad), lambda i: (0, 0),
                                pipeline_mode=pl.Buffered(1)),
                   pl.BlockSpec((FD_pad, ED_pad), lambda i: (0, 0),
                                pipeline_mode=pl.Buffered(1))]
        kernel = _two_stage_kernel
        w_bytes = (CKK_pad * FD_pad + FD_pad * ED_pad) * 2
        per_row_macs = CKK_pad * FD_pad + FD_pad * ED_pad
    # TODO(synk): add a K (CKK) grid axis + f32 accumulator scratch when CKK_pad*ED_pad weights
    # exceed a few MiB, to keep resident weights bounded on v7x's 64 MiB VMEM.

    def apply(x):
        B, C_in, H, W = x.shape
        assert C_in == C and H % patch == 0 and W % patch == 0
        Hp, Wp = H // patch, W // patch
        N = Hp * Wp
        R = B * N

        TR = _pick_row_tile(R, row_tile)
        R_pad = _round_up(R, TR)

        # im2col glue: cast to bf16 BEFORE the 6-D transpose (half the HBM bytes moved);
        # under jit the cast/transpose/pad fuse into one pass.
        xp = x.astype(compute_dtype).reshape(B, C, Hp, patch, Wp, patch)
        xp = xp.transpose(0, 2, 4, 1, 3, 5).reshape(R, CKK)
        xp = jnp.pad(xp, ((0, R_pad - R), (0, CKK_pad - CKK)))

        in_itemsize = jnp.dtype(compute_dtype).itemsize
        out_itemsize = jnp.dtype(out_dtype).itemsize
        # Per-step VMEM: double-buffered patch & output tiles, single-buffered weights/bias,
        # plus margin for the two-stage intermediate and Mosaic internal scratch.
        vmem_need = (2 * TR * CKK_pad * in_itemsize + 2 * TR * ED_pad * out_itemsize
                     + w_bytes + ED_pad * 4 + TR * FD_pad * 6)
        vmem_limit = int(min(max(2 * vmem_need + (4 << 20), 16 << 20), 64 << 20))

        cost = pl.CostEstimate(
            flops=2 * R_pad * per_row_macs,
            transcendentals=0,
            bytes_accessed=(R_pad * CKK_pad * in_itemsize + w_bytes + ED_pad * 4
                            + R_pad * ED_pad * out_itemsize),
        )

        out = pl.pallas_call(
            kernel,
            out_shape=jax.ShapeDtypeStruct((R_pad, ED_pad), out_dtype),
            grid_spec=pltpu.PrefetchScalarGridSpec(
                num_scalar_prefetch=0,
                grid=(R_pad // TR,),
                in_specs=([pl.BlockSpec((TR, CKK_pad), lambda i: (i, 0))]    # streamed patches
                          + w_specs                                          # resident weights
                          + [pl.BlockSpec((1, ED_pad), lambda i: (0, 0),
                                          pipeline_mode=pl.Buffered(1))]),   # resident bias
                out_specs=pl.BlockSpec((TR, ED_pad), lambda i: (i, 0)),
            ),
            compiler_params=pltpu.CompilerParams(
                dimension_semantics=("parallel",),
                vmem_limit_bytes=vmem_limit),
            cost_estimate=cost,
        )(xp, *weights, b_pad)

        return out[:R, :ED].reshape(B, N, ED)

    return apply


def hybrid_embed(x, conv_w, conv_b, proj_w, proj_b, *, patch, **kw):
    return make_hybrid_embed(conv_w, conv_b, proj_w, proj_b, patch=patch, **kw)(x)


def _reference(x, conv_w, conv_b, proj_w, proj_b, *, patch):
    # Pure-JAX f32 reference following the PyTorch module literally.
    feat = lax.conv_general_dilated(
        x, conv_w, window_strides=(patch, patch), padding="VALID",
        dimension_numbers=("NCHW", "OIHW", "NCHW"))
    feat = feat + conv_b.reshape(1, -1, 1, 1)                 # backbone(x)[-1]
    B, FD, Hp, Wp = feat.shape
    t = feat.reshape(B, FD, Hp * Wp).transpose(0, 2, 1)       # flatten(2).transpose(1, 2)
    return jnp.einsum("bnf,ef->bne", t, proj_w) + proj_b      # nn.Linear


def _run_case(key, *, B, C, H, W, patch, FD, ED):
    k_x, k_cw, k_cb, k_pw, k_pb = jax.random.split(key, 5)
    x = jax.random.normal(k_x, (B, C, H, W), dtype=jnp.float32)
    # deterministic PyTorch-style uniform init
    cbound = 1.0 / (C * patch * patch) ** 0.5
    conv_w = jax.random.uniform(k_cw, (FD, C, patch, patch), jnp.float32, -cbound, cbound)
    conv_b = jax.random.uniform(k_cb, (FD,), jnp.float32, -cbound, cbound)
    pbound = 1.0 / FD ** 0.5
    proj_w = jax.random.uniform(k_pw, (ED, FD), jnp.float32, -pbound, pbound)
    proj_b = jax.random.uniform(k_pb, (ED,), jnp.float32, -pbound, pbound)

    fn = jax.jit(make_hybrid_embed(conv_w, conv_b, proj_w, proj_b, patch=patch))
    out = jax.block_until_ready(fn(x))

    ref = _reference(x, conv_w, conv_b, proj_w, proj_b, patch=patch)
    assert out.shape == (B, (H // patch) * (W // patch), ED), out.shape
    # bf16 MXU inputs + bf16 output (f32 accumulation, f32 bias) -> looser-than-f32 tolerance.
    assert jnp.allclose(out.astype(jnp.float32), ref, rtol=3e-2, atol=3e-2), "mismatch vs reference"


if __name__ == "__main__":
    key = jax.random.PRNGKey(0)
    k1, k2 = jax.random.split(key)
    # Small case: FD comparable to padded dims -> fused conv+proj single-matmul path.
    _run_case(k1, B=2, C=4, H=16, W=16, patch=4, FD=16, ED=32)
    # FD << CKK, ED -> the two-matmul (unfused) kernel path is selected by the FLOP heuristic.
    _run_case(k2, B=2, C=3, H=32, W=32, patch=16, FD=16, ED=256)
    print("KERNEL_OK")
</pallas_src>

<mosaic_0001>
module attributes {stable_mosaic.version = 11 : i64} {
  func.func @_fused_kernel(%arg0: i32, %arg1: memref<16x128xbf16, #tpu.memory_space<vmem>>, %arg2: memref<128x128xbf16, #tpu.memory_space<vmem>>, %arg3: memref<1x128xf32, #tpu.memory_space<vmem>>, %arg4: memref<16x128xbf16, #tpu.memory_space<vmem>>) attributes {dimension_semantics = [#tpu.dimension_semantics<parallel>], iteration_bounds = array<i64: 2>, scalar_prefetch = 0 : i64, scratch_operands = 0 : i64, tpu.core_type = #tpu.core_type<tc>, window_params = [{transform_indices = @transform_0, window_bounds = array<i64: 16, 128>}, {pipeline_mode = #tpu.pipeline_mode<synchronous>, transform_indices = @transform_1, window_bounds = array<i64: 128, 128>}, {pipeline_mode = #tpu.pipeline_mode<synchronous>, transform_indices = @transform_2, window_bounds = array<i64: 1, 128>}, {transform_indices = @transform_3, window_bounds = array<i64: 16, 128>}]} {
    %c0 = arith.constant 0 : index
    %c0_0 = arith.constant 0 : index
    %0 = vector.load %arg1[%c0, %c0_0] : memref<16x128xbf16, #tpu.memory_space<vmem>>, vector<16x128xbf16>
    %c0_1 = arith.constant 0 : index
    %c0_2 = arith.constant 0 : index
    %1 = vector.load %arg2[%c0_1, %c0_2] : memref<128x128xbf16, #tpu.memory_space<vmem>>, vector<128x128xbf16>
    %cst = arith.constant dense<0.000000e+00> : vector<16x128xf32>
    %2 = tpu.matmul %0, %1, %cst {dimension_numbers = #tpu.dot_dimension_numbers<[1], [0], [0], [1], [0, 0, 1, 1], [], []>} : vector<16x128xbf16>, vector<128x128xbf16>, vector<16x128xf32> -> vector<16x128xf32>
    %c0_3 = arith.constant 0 : index
    %c0_4 = arith.constant 0 : index
    %3 = vector.load %arg3[%c0_3, %c0_4] : memref<1x128xf32, #tpu.memory_space<vmem>>, vector<1x128xf32>
    %4 = vector.broadcast %3 : vector<1x128xf32> to vector<16x128xf32>
    %5 = arith.addf %2, %4 : vector<16x128xf32>
    %6 = arith.truncf %5 : vector<16x128xf32> to vector<16x128xbf16>
    %c0_5 = arith.constant 0 : index
    %c0_6 = arith.constant 0 : index
    %7 = vector.load %arg4[%c0_5, %c0_6] : memref<16x128xbf16, #tpu.memory_space<vmem>>, vector<16x128xbf16>
    tpu.vector_store %arg4[%c0_5, %c0_6], %6 {strides = array<i32>} : memref<16x128xbf16, #tpu.memory_space<vmem>>, vector<16x128xbf16>,
    return
  }
  func.func @transform_0(%arg0: i32) -> (i32, i32) {
    %c0_i32 = arith.constant 0 : i32
    %c0_i32_0 = arith.constant 0 : i32
    return %arg0, %c0_i32 : i32, i32
  }
  func.func @transform_1(%arg0: i32) -> (i32, i32) {
    %c0_i32 = arith.constant 0 : i32
    %c0_i32_0 = arith.constant 0 : i32
    %c0_i32_1 = arith.constant 0 : i32
    return %c0_i32, %c0_i32_0 : i32, i32
  }
  func.func @transform_2(%arg0: i32) -> (i32, i32) {
    %c0_i32 = arith.constant 0 : i32
    %c0_i32_0 = arith.constant 0 : i32
    %c0_i32_1 = arith.constant 0 : i32
    return %c0_i32, %c0_i32_0 : i32, i32
  }
  func.func @transform_3(%arg0: i32) -> (i32, i32) {
    %c0_i32 = arith.constant 0 : i32
    %c0_i32_0 = arith.constant 0 : i32
    return %arg0, %c0_i32 : i32, i32
  }
}

</mosaic_0001>

<llo_original>
// kernel: apply.1
$region0: #{apply.1}
  #allocation0 [shape = 'u32[]', space=smem, size = 0x4, offset = 0x4, fixed_abs, tag = 'smem constant byte address 0x4 - core index']
  #allocation1 [shape = 'u32[144,128]{1,0:T(1,128)}', space=vmem, size = 0x12000, scoped, tag = 'internal scratch']
  %s0 = inlined_call_operand.vmem [shape: bf16[32,128], index: 0, kind: input, shape index: {}]
  %s1 = inlined_call_operand.vmem [shape: bf16[128,128], index: 1, kind: input, shape index: {}]
  %s2 = inlined_call_operand.vmem [shape: f32[1,128], index: 2, kind: input, shape index: {}]
  %s3 = inlined_call_operand.hbm [shape: bf16[32,128], index: 3, kind: output, shape index: {}]
  %s4 = sld [smem:[#allocation0]]
  $region45: #{apply.1} parent=0
    _
  %s6 = ssub.s32 1, %s4
  %s7 = scalar_select 0, %s6, %s4
  $region1: #{apply.1} parent=0
    #allocation2 [shape = 'u8[8192]{0}', space=vmem, size = 0x2000, scoped, tag = 'output window, operand 0']
    #allocation3 [shape = 's32[2]{0}', space=sflag, size = 0x8, scoped, tag = 'scoped memory for apply.1']
    %8 = vsyncpa [#allocation3], 0
    %s9 = scalar_lea.sflag [#allocation3], 1
    %10 = vsyncpa %s9, 0
    loop: start=0, step=1, limit=4
    $region2: #{apply.1} parent=1 // loop_pre_header
      _
    $region3: #{apply.1} parent=1 // loop_header
      %s12 = sphi 0, %s16
      %p13 = scmp.ge.s32.totalorder %s12, 4
      %s22 = sphi 0, %s24
      %s25 = sphi 0, %s22
      %s26 = sphi 0, %s25
      %s42 = sphi 0, %s26
      %s46 = sphi 0, %s46
      %s48 = sphi 0, %s46
      %s49 = sphi 0, %s48
      %s63 = sphi 0, %s49
      %s67 = sphi 0, %s67
      %s69 = sphi 0, %s67
      %s70 = sphi 0, %s69
      %s84 = sphi 0, %s70
      %s90 = sphi 0, %s92
      %s93 = sphi 0, %s90
      %s94 = sphi 0, %s93
      %s110 = sphi 0, %s94
    $region4: #{apply.1} parent=1 // loop_header_branch
      %15 = sbr.rel (%p13) target = $region8
    $region5: #{apply.1} parent=1 // loop_body
      %s17 = ssub.s32 %s12, 1
      %s18 = ssub.s32 %s12, 2
      %s19 = sadd.s32 %s12, 1
      %s20 = ssub.s32 %s12, %s19
      %p21 = scmp.eq.s32.totalorder %s20, 0
      %s23 = sadd.s32 %s22, 1
      %s24 = scalar_select %p21, %s22, %s23
      %p27 = pneg %p21
      %p28 = scmp.eq.s32.totalorder %s12, 1
      %p29 = por %p27, %p28
      %p30 = scmp.ne.s32.totalorder %s22, %s25
      %p31 = scmp.eq.s32.totalorder %s12, 0
      %p32 = por %p30, %p31
      %p33 = scmp.ne.s32.totalorder %s22, %s25
      %p34 = scmp.eq.s32.totalorder %s17, 1
      %p35 = por %p33, %p34
      %p36 = scmp.ne.s32.totalorder %s25, %s26
      %p37 = scmp.eq.s32.totalorder %s17, 0
      %p38 = por %p36, %p37
      %p39 = scmp.ne.s32.totalorder %s25, %s26
      %p40 = scmp.eq.s32.totalorder %s18, 1
      %p41 = por %p39, %p40
      %p43 = scmp.ne.s32.totalorder %s26, %s42
      %p44 = scmp.eq.s32.totalorder %s18, 0
      %p45 = por %p43, %p44
      %s47 = sadd.s32 %s46, 1
      %p50 = scmp.eq.s32.totalorder %s12, 1
      %p51 = scmp.ne.s32.totalorder %s46, %s48
      %p52 = scmp.eq.s32.totalorder %s12, 0
      %p53 = por %p51, %p52
      %p54 = scmp.ne.s32.totalorder %s46, %s48
      %p55 = scmp.eq.s32.totalorder %s17, 1
      %p56 = por %p54, %p55
      %p57 = scmp.ne.s32.totalorder %s48, %s49
      %p58 = scmp.eq.s32.totalorder %s17, 0
      %p59 = por %p57, %p58
      %p60 = scmp.ne.s32.totalorder %s48, %s49
      %p61 = scmp.eq.s32.totalorder %s18, 1
      %p62 = por %p60, %p61
      %p64 = scmp.ne.s32.totalorder %s49, %s63
      %p65 = scmp.eq.s32.totalorder %s18, 0
      %p66 = por %p64, %p65
      %s68 = sadd.s32 %s67, 1
      %p71 = scmp.eq.s32.totalorder %s12, 1
      %p72 = scmp.ne.s32.totalorder %s67, %s69
      %p73 = scmp.eq.s32.totalorder %s12, 0
      %p74 = por %p72, %p73
      %p75 = scmp.ne.s32.totalorder %s67, %s69
      %p76 = scmp.eq.s32.totalorder %s17, 1
      %p77 = por %p75, %p76
      %p78 = scmp.ne.s32.totalorder %s69, %s70
      %p79 = scmp.eq.s32.totalorder %s17, 0
      %p80 = por %p78, %p79
      %p81 = scmp.ne.s32.totalorder %s69, %s70
      %p82 = scmp.eq.s32.totalorder %s18, 1
      %p83 = por %p81, %p82
      %p85 = scmp.ne.s32.totalorder %s70, %s84
      %p86 = scmp.eq.s32.totalorder %s18, 0
      %p87 = por %p85, %p86
      %s88 = ssub.s32 %s12, %s19
      %p89 = scmp.eq.s32.totalorder %s88, 0
      %s91 = sadd.s32 %s90, 1
      %s92 = scalar_select %p89, %s90, %s91
      %p95 = pneg %p89
      %p96 = scmp.eq.s32.totalorder %s12, 1
      %p97 = por %p95, %p96
      %p98 = scmp.ne.s32.totalorder %s90, %s93
      %p99 = scmp.eq.s32.totalorder %s12, 0
      %p100 = por %p98, %p99
      %p101 = scmp.ne.s32.totalorder %s90, %s93
      %p102 = scmp.eq.s32.totalorder %s17, 1
      %p103 = por %p101, %p102
      %p104 = scmp.ne.s32.totalorder %s93, %s94
      %p105 = scmp.eq.s32.totalorder %s17, 0
      %p106 = por %p104, %p105
      %p107 = scmp.ne.s32.totalorder %s93, %s94
      %p108 = scmp.eq.s32.totalorder %s18, 1
      %p109 = por %p107, %p108
      %p111 = scmp.ne.s32.totalorder %s94, %s110
      %p112 = scmp.eq.s32.totalorder %s18, 0
      %p113 = por %p111, %p112
      %p114 = scmp.le.s32.totalorder 1, %s12
      %p115 = scmp.lt.s32.totalorder %s12, 3
      %p116 = pnand %p114, %p115
      %p117 = pneg %p116
      // Predicated region
      $region9: #{apply.1} parent=5 // pred_check
        _
      $region10: #{apply.1} parent=5 // pred_check_branch
        %119 = sbr.rel (%p116) target = $region12
      $region11: #{apply.1} parent=5 // pred_region
        %s120 = ssub.s32 %s12, 1
        // Predicated region
        $region13: #{apply.1} parent=11 // pred_check
          %p121 = pneg %p59
        $region14: #{apply.1} parent=11 // pred_check_branch
          %123 = sbr.rel (%p121) target = $region16
        $region15: #{apply.1} parent=11 // pred_region
          _
        $region16: #{apply.1} parent=11 // pred_fallthru
          _
        // Predicated region
        $region17: #{apply.1} parent=11 // pred_check
          %p124 = pneg %p80
        $region18: #{apply.1} parent=11 // pred_check_branch
          %126 = sbr.rel (%p124) target = $region20
        $region19: #{apply.1} parent=11 // pred_region
          _
        $region20: #{apply.1} parent=11 // pred_fallthru
          _
      $region12: #{apply.1} parent=5 // pred_fallthru
        _
      %p127 = scmp.lt.s32.totalorder %s12, 2
      // Predicated region
      $region21: #{apply.1} parent=5 // pred_check
        %p128 = pneg %p127
      $region22: #{apply.1} parent=5 // pred_check_branch
        %130 = sbr.rel (%p128) target = $region24
      $region23: #{apply.1} parent=5 // pred_region
        // Predicated region
        $region25: #{apply.1} parent=23 // pred_check
          %p131 = pneg %p32
        $region26: #{apply.1} parent=23 // pred_check_branch
          %133 = sbr.rel (%p131) target = $region28
        $region27: #{apply.1} parent=23 // pred_region
          %s134 = smul.u32 2, %s12
          %p135 = scmp.lt.s32.totalorder %s134, 3
          %s136 = scalar_select %p135, %s134, 3
          %s137 = smul.addr %s136, 4
          %s138 = scalar_lea.vmem %s0, %s137
          %s139 = smul.u32 2, %s12
        $region28: #{apply.1} parent=23 // pred_fallthru
          _
      $region24: #{apply.1} parent=5 // pred_fallthru
        _
      %p140 = scmp.le.s32.totalorder 1, %s12
      %p141 = scmp.lt.s32.totalorder %s12, 3
      %p142 = pnand %p140, %p141
      %p143 = pneg %p142
      // Predicated region
      $region29: #{apply.1} parent=5 // pred_check
        _
      $region30: #{apply.1} parent=5 // pred_check_branch
        %145 = sbr.rel (%p142) target = $region32
      $region31: #{apply.1} parent=5 // pred_region
        %s146 = ssub.s32 %s12, 1
        %s147 = smul.u32 2, %s17
        %p148 = scmp.lt.s32.totalorder %s147, 3
        %s149 = scalar_select %p148, %s147, 3
        %s150 = smul.addr %s149, 4
        %s151 = scalar_lea.vmem %s0, %s150
        %p152 = pneg %p38
        %p153 = pneg %p35
        %p154 = pneg %p59
        %p155 = pneg %p56
        %p156 = pneg %p80
        %p157 = pneg %p77
        %p158 = pneg %p106
        %p159 = pneg %p103
        %s160 = sand.u32 %s93, 1
        %s161 = scalar_lea.sflag [#allocation3], %s160
        %s162 = sand.u32 %s93, 1
        %s163 = smul.addr %s162, 8
        %s164 = scalar_lea.vmem [#allocation2], %s163
        %s165 = smul.u32 2, %s17
        %p166 = scmp.lt.s32.totalorder %s165, 3
        %s167 = scalar_select %p166, %s165, 3
        %s168 = smul.addr %s167, 4
        %s169 = scalar_lea.vmem %s0, %s168
        %s170 = smul.u32 2, %s17
        %s171 = smul.u32 2, %s17
        %v173 = vld [vmem:[%s169] sm:$0xf]
        %v174 = vld [vmem:[%s169 + $0x4] sm:$0xf]
        %v175 = vld [vmem:[%s1] sm:$0xf]
        %v176 = vld [vmem:[%s1 + $0x4] sm:$0xf]
        %v177 = vld [vmem:[%s1 + $0x8] sm:$0xf]
        %v178 = vld [vmem:[%s1 + $0xc] sm:$0xf]
        %v179 = vld [vmem:[%s1 + $0x10] sm:$0xf]
        %v180 = vld [vmem:[%s1 + $0x14] sm:$0xf]
        %v181 = vld [vmem:[%s1 + $0x18] sm:$0xf]
        %v182 = vld [vmem:[%s1 + $0x1c] sm:$0xf]
        %v183 = vld [vmem:[%s1 + $0x20] sm:$0xf]
        %v184 = vld [vmem:[%s1 + $0x24] sm:$0xf]
        %v185 = vld [vmem:[%s1 + $0x28] sm:$0xf]
        %v186 = vld [vmem:[%s1 + $0x2c] sm:$0xf]
        %v187 = vld [vmem:[%s1 + $0x30] sm:$0xf]
        %v188 = vld [vmem:[%s1 + $0x34] sm:$0xf]
        %v189 = vld [vmem:[%s1 + $0x38] sm:$0xf]
        %v190 = vld [vmem:[%s1 + $0x3c] sm:$0xf]
        %v191 = vld [vmem:[%s2] sm:$0x1]
        %v193 = vlaneseq
        %v194 = vshrl.u32 %v193, 7
        %v195 = vsub.s32 0, %v194
        %v196 = vrot.slane %v191, %v195
        %v200 = vunpack.c.l.b16 %v173
        %v201 = vunpack.c.l.b16 %v174
        %v202 = vpack.c.b16 %v201, %v200
        %v220 = vunpack.c.l.b16 %v175
        %v221 = vunpack.c.l.b16 %v176
        %v222 = vunpack.c.l.b16 %v177
        %v223 = vunpack.c.l.b16 %v178
        %v224 = vunpack.c.l.b16 %v179
        %v225 = vunpack.c.l.b16 %v180
        %v226 = vunpack.c.l.b16 %v181
        %v227 = vunpack.c.l.b16 %v182
        %v228 = vunpack.c.l.b16 %v183
        %v229 = vunpack.c.l.b16 %v184
        %v230 = vunpack.c.l.b16 %v185
        %v231 = vunpack.c.l.b16 %v186
        %v232 = vunpack.c.l.b16 %v187
        %v233 = vunpack.c.l.b16 %v188
        %v234 = vunpack.c.l.b16 %v189
        %v235 = vunpack.c.l.b16 %v190
        %v236 = vpack.c.b16 %v221, %v220
        %v237 = vpack.c.b16 %v223, %v222
        %v238 = vpack.c.b16 %v225, %v224
        %v239 = vpack.c.b16 %v227, %v226
        %v240 = vpack.c.b16 %v229, %v228
        %v241 = vpack.c.b16 %v231, %v230
        %v242 = vpack.c.b16 %v233, %v232
        %v243 = vpack.c.b16 %v235, %v234
        %252 = vmatprep.subr.bf16.mxu0 0
        %253 = vmatpush1.bf16.msra.mxu0 %v243
        %254 = vmatprep.subr.bf16.mxu0 0
        %255 = vmatpush1.bf16.msra.mxu0 %v242
        %256 = vmatprep.subr.bf16.mxu0 0
        %257 = vmatpush1.bf16.msra.mxu0 %v241
        %258 = vmatprep.subr.bf16.mxu0 0
        %259 = vmatpush1.bf16.msra.mxu0 %v240
        %260 = vmatprep.subr.bf16.mxu0 0
        %261 = vmatpush1.bf16.msra.mxu0 %v239
        %262 = vmatprep.subr.bf16.mxu0 0
        %263 = vmatpush1.bf16.msra.mxu0 %v238
        %264 = vmatprep.subr.bf16.mxu0 0
        %265 = vmatpush1.bf16.msra.mxu0 %v237
        %266 = vmatprep.subr.bf16.mxu0 0
        %267 = vmatpush1.bf16.msra.mxu0 %v236
        %268 = vmatprep.subr.bf16.mxu0 0
        %269 = vmatpush2.bf16.msra.mxu0 0
        %270 = vmatprep.subr.bf16.mxu0 0
        %271 = vmatpush2.bf16.msra.mxu0 0
        %272 = vmatprep.subr.bf16.mxu0 0
        %273 = vmatpush2.bf16.msra.mxu0 0
        %274 = vmatprep.subr.bf16.mxu0 0
        %275 = vmatpush2.bf16.msra.mxu0 0
        %276 = vmatprep.subr.bf16.mxu0 0
        %277 = vmatpush2.bf16.msra.mxu0 0
        %278 = vmatprep.subr.bf16.mxu0 0
        %279 = vmatpush2.bf16.msra.mxu0 0
        %280 = vmatprep.subr.bf16.mxu0 0
        %281 = vmatpush2.bf16.msra.mxu0 0
        %282 = vmatprep.subr.bf16.mxu0 0
        %283 = vmatpush2.bf16.msra.mxu0 0
        %284 = vmatprep.mubr.bf16.mxu0 0
        %285 = vmatmul.mubr.bf16.gmra.mxu0 %v202
        %v286 = vpop.f32.mrf.mxu0
        %v287 = vadd.f32 %v196, %v286
        %v288 = vpop.f32.mrf.mxu0
        %v289 = vpop.f32.mrf.mxu0
        %v290 = vadd.f32 %v196, %v289
        %v291 = vpop.f32.mrf.mxu0
        %292 = vdwg.mxu0
        %v293 = vpack.c.bf16 %v290, %v287
        %v295 = vunpack.c.l.b16 %v293
        %v296 = vunpack.c.h.b16 %v293
        %v297 = vpack.c.b16 %v295, %v295
        %v298 = vpack.c.b16 %v296, %v296
        %301 = vst [vmem:[%s164] sm:$0xf] %v297
        %302 = vst [vmem:[%s164 + $0x4] sm:$0xf] %v298
        %s303 = sand.u32 %s93, 1
        %s304 = scalar_lea.sflag [#allocation3], %s303
        %s305 = sand.u32 %s93, 1
        %s306 = smul.addr %s305, 8
        %s307 = scalar_lea.vmem [#allocation2], %s306
        // Predicated region
        $region33: #{apply.1} parent=31 // pred_check
          %p308 = pneg %p103
        $region34: #{apply.1} parent=31 // pred_check_branch
          %310 = sbr.rel (%p308) target = $region36
        $region35: #{apply.1} parent=31 // pred_region
          %s311 = smul.u32 2, %s17
          %s313 = ssub.s32 128, 128
          %314 = vsyncadd %s304, %s313
          %s315 = smul.addr %s311, 64
          %s316 = scalar_lea.hbm %s3, %s315
          %s317 = sshll.u32 %s307, 4
          %s318 = int_to_ptr.vmem [resolvable:$true] %s317
          %323 = dma.vmem_to_hbm [thread:$0]  %s318, 128, %s316, %s304, 64, 64, 4
        $region36: #{apply.1} parent=31 // pred_fallthru
          _
      $region32: #{apply.1} parent=5 // pred_fallthru
        _
      %p324 = scmp.le.s32.totalorder 2, %s12
      // Predicated region
      $region37: #{apply.1} parent=5 // pred_check
        %p325 = pneg %p324
      $region38: #{apply.1} parent=5 // pred_check_branch
        %327 = sbr.rel (%p325) target = $region40
      $region39: #{apply.1} parent=5 // pred_region
        %s328 = ssub.s32 %s12, 2
        // Predicated region
        $region41: #{apply.1} parent=39 // pred_check
          %p329 = pneg %p109
        $region42: #{apply.1} parent=39 // pred_check_branch
          %331 = sbr.rel (%p329) target = $region44
        $region43: #{apply.1} parent=39 // pred_region
          %s332 = sand.u32 %s94, 1
          %s333 = scalar_lea.sflag [#allocation3], %s332
          %s334 = sand.u32 %s94, 1
          %s335 = smul.addr %s334, 8
          %s336 = scalar_lea.vmem [#allocation2], %s335
          %337 = dma.done %s333, 128
        $region44: #{apply.1} parent=39 // pred_fallthru
          _
      $region40: #{apply.1} parent=5 // pred_fallthru
        _
    $region6: #{apply.1} parent=1 // loop_footer
      %s16 = sadd.s32 1, %s12
    $region7: #{apply.1} parent=1 // loop_footer_branch
      %11 = sbr.rel target = $region3
    $region8: #{apply.1} parent=1 // loop_exit
      _
    %338 = vsyncpa [#allocation3], 1
    %s339 = scalar_lea.sflag [#allocation3], 1
    %340 = vsyncpa %s339, 1

</llo_original>
